<compile_context>
chip_gen: v5e
topology: v5e:2x2
jax: 0.10.0
libtpu: 0.0.40
codegen_flags: <defaults>
</compile_context>

<pallas_src>
import jax
import jax.numpy as jnp
from jax.experimental import pallas as pl
from jax.experimental.pallas import tpu as pltpu


def _attention_kernel(q_ref, k_ref, v_ref, m_ref, out_ref, attn_ref):
    q = q_ref[...]          # (bn, E)    f32
    k = k_ref[...]          # (bn, K, E) f32
    v = v_ref[...]          # (bn, K, E) f32
    m = m_ref[...]          # (bn, K)    int32 (0 = masked, nonzero = keep)

    # energy[b, j] = <q[b, :], k[b, j, :]>
    # The contraction is only E elements long, so VPU broadcast-multiply plus
    # a lane-axis reduce beats a <0.1%-utilized batched MXU matmul.
    energy = jnp.sum(q[:, None, :] * k, axis=-1)            # (bn, K)
    energy = jnp.where(m == 0, -1e20, energy)               # masked_fill

    # Numerically-stable softmax over the key axis (matches torch.softmax).
    e_max = jnp.max(energy, axis=-1, keepdims=True)
    p = jnp.exp(energy - e_max)
    attn = p / jnp.sum(p, axis=-1, keepdims=True)           # (bn, K)

    # out[b, e] = sum_j attn[b, j] * v[b, j, e]   (VPU mul + reduce again)
    out = jnp.sum(attn[:, :, None] * v, axis=1)             # (bn, E)

    out_ref[...] = jnp.tanh(out).astype(out_ref.dtype)
    attn_ref[...] = attn.astype(attn_ref.dtype)


def _choose_batch_tile(n, block_n, bytes_per_batch):
    """Pick (bn, pad): bn divides n+pad, is a sublane multiple (or == n), and
    the double-buffered tile stays well inside the 32 MiB scoped-VMEM default
    (also safe against v7x's 64 MiB physical VMEM)."""
    vmem_budget = 24 << 20
    cap = max(8, (vmem_budget // max(1, 2 * bytes_per_batch)) // 8 * 8)
    block_n = max(1, min(block_n, cap))
    if n <= block_n:
        return n, 0                        # single tile == full batch dim
    bn = max(8, (block_n // 8) * 8)
    if n % bn == 0:
        return bn, 0
    # Prefer a (multiple-of-8) divisor of n so no padded-tail HBM copies.
    for d in range(bn, 7, -8):
        if n % d == 0 and 4 * d >= bn:
            return d, 0
    return bn, (-n) % bn


def attention_forward(query, keys, values, mask=None, *, block_n=512):
    """query: (N, 1, E), keys/values: (N, K, E), mask: (N, K) or None.

    Returns (tanh(output), attention) with shapes (N, 1, E) and (N, 1, K),
    matching the PyTorch module's mask-path forward (query_len == 1).
    """
    query = jnp.asarray(query, jnp.float32)
    keys = jnp.asarray(keys, jnp.float32)
    values = jnp.asarray(values, jnp.float32)

    N, Q, E = query.shape
    K = keys.shape[1]
    if Q != 1:
        # TODO(synk): the PyTorch module only works for query_len == 1 when a
        # mask is given (squeeze + masked_fill broadcasting); mirror that.
        raise ValueError("attention_forward implements the query_len == 1 path")

    q2 = query.reshape(N, E)
    if mask is None:
        # TODO(synk): the PyTorch mask=None + query_len==1 path crashes
        # upstream (softmax dim=2 on a squeezed 2-D tensor); here mask=None is
        # treated as "no key is masked" instead.
        keep = jnp.ones((N, K), dtype=jnp.int32)
    else:
        keep = (jnp.asarray(mask) != 0).astype(jnp.int32)

    # f32 bytes moved per batch row (q, k, v, mask, out, attn).
    bytes_per_batch = 4 * (E + 2 * K * E + K + E + K)
    bn, pad = _choose_batch_tile(N, block_n, bytes_per_batch)
    if pad:
        q2 = jnp.pad(q2, ((0, pad), (0, 0)))
        keys = jnp.pad(keys, ((0, pad), (0, 0), (0, 0)))
        values = jnp.pad(values, ((0, pad), (0, 0), (0, 0)))
        keep = jnp.pad(keep, ((0, pad), (0, 0)))
    n_pad = N + pad

    out, attn = pl.pallas_call(
        _attention_kernel,
        out_shape=(jax.ShapeDtypeStruct((n_pad, E), jnp.float32),
                   jax.ShapeDtypeStruct((n_pad, K), jnp.float32)),
        grid_spec=pltpu.PrefetchScalarGridSpec(
            num_scalar_prefetch=0,
            grid=(n_pad // bn,),
            in_specs=[
                pl.BlockSpec((bn, E), lambda i: (i, 0)),
                pl.BlockSpec((bn, K, E), lambda i: (i, 0, 0)),
                pl.BlockSpec((bn, K, E), lambda i: (i, 0, 0)),
                pl.BlockSpec((bn, K), lambda i: (i, 0)),
            ],
            out_specs=[
                pl.BlockSpec((bn, E), lambda i: (i, 0)),
                pl.BlockSpec((bn, K), lambda i: (i, 0)),
            ],
        ),
        compiler_params=pltpu.CompilerParams(
            dimension_semantics=("parallel",)),
    )(q2, keys, values, keep)

    if pad:
        out, attn = out[:N], attn[:N]
    return out.reshape(N, 1, E), attn.reshape(N, 1, K)


def _reference(query, keys, values, mask):
    energy = jnp.einsum('nqe,nke->nqk', query, keys,
                        precision=jax.lax.Precision.HIGHEST)
    if mask is not None:
        energy = jnp.where(mask[:, None, :] == 0, -1e20, energy)
    attention = jax.nn.softmax(energy, axis=-1)
    output = jnp.einsum('nqk,nke->nqe', attention, values,
                        precision=jax.lax.Precision.HIGHEST)
    return jnp.tanh(output), attention


if __name__ == "__main__":
    key = jax.random.PRNGKey(0)
    k1, k2, k3, k4 = jax.random.split(key, 4)

    # Small shapes consistent with the module: N batches, 1 query, K reviews.
    N, Q, K, E = 4, 1, 8, 64
    query = jax.random.normal(k1, (N, Q, E), dtype=jnp.float32)
    keys = jax.random.normal(k2, (N, K, E), dtype=jnp.float32)
    values = jax.random.normal(k3, (N, K, E), dtype=jnp.float32)
    mask = (jax.random.uniform(k4, (N, K)) > 0.3).astype(jnp.float32)
    mask = mask.at[:, 0].set(1.0)   # keep at least one key per row unmasked

    out, attn = attention_forward(query, keys, values, mask)
    out, attn = jax.block_until_ready((out, attn))

    ref_out, ref_attn = _reference(query, keys, values, mask)
    assert out.shape == (N, 1, E) and attn.shape == (N, 1, K)
    assert jnp.allclose(out, ref_out, rtol=1e-4, atol=1e-5)
    assert jnp.allclose(attn, ref_attn, rtol=1e-4, atol=1e-5)
    print("KERNEL_OK")
</pallas_src>

<mosaic_0001>
module attributes {stable_mosaic.version = 11 : i64} {
  func.func @_attention_kernel(%arg0: i32, %arg1: memref<4x64xf32, #tpu.memory_space<vmem>>, %arg2: memref<4x8x64xf32, #tpu.memory_space<vmem>>, %arg3: memref<4x8x64xf32, #tpu.memory_space<vmem>>, %arg4: memref<4x8xi32, #tpu.memory_space<vmem>>, %arg5: memref<4x64xf32, #tpu.memory_space<vmem>>, %arg6: memref<4x8xf32, #tpu.memory_space<vmem>>) attributes {dimension_semantics = [#tpu.dimension_semantics<parallel>], iteration_bounds = array<i64: 1>, scalar_prefetch = 0 : i64, scratch_operands = 0 : i64, tpu.core_type = #tpu.core_type<tc>, window_params = [{transform_indices = @transform_0, window_bounds = array<i64: 4, 64>}, {transform_indices = @transform_1, window_bounds = array<i64: 4, 8, 64>}, {transform_indices = @transform_2, window_bounds = array<i64: 4, 8, 64>}, {transform_indices = @transform_3, window_bounds = array<i64: 4, 8>}, {transform_indices = @transform_4, window_bounds = array<i64: 4, 64>}, {transform_indices = @transform_5, window_bounds = array<i64: 4, 8>}]} {
    %c0 = arith.constant 0 : index
    %c0_0 = arith.constant 0 : index
    %0 = vector.load %arg1[%c0, %c0_0] : memref<4x64xf32, #tpu.memory_space<vmem>>, vector<4x64xf32>
    %c0_1 = arith.constant 0 : index
    %c0_2 = arith.constant 0 : index
    %c0_3 = arith.constant 0 : index
    %1 = vector.load %arg2[%c0_1, %c0_2, %c0_3] : memref<4x8x64xf32, #tpu.memory_space<vmem>>, vector<4x8x64xf32>
    %c0_4 = arith.constant 0 : index
    %c0_5 = arith.constant 0 : index
    %c0_6 = arith.constant 0 : index
    %2 = vector.load %arg3[%c0_4, %c0_5, %c0_6] : memref<4x8x64xf32, #tpu.memory_space<vmem>>, vector<4x8x64xf32>
    %c0_7 = arith.constant 0 : index
    %c0_8 = arith.constant 0 : index
    %3 = vector.load %arg4[%c0_7, %c0_8] : memref<4x8xi32, #tpu.memory_space<vmem>>, vector<4x8xi32>
    %4 = vector.shape_cast %0 : vector<4x64xf32> to vector<4x1x64xf32>
    %5 = vector.broadcast %4 : vector<4x1x64xf32> to vector<4x8x64xf32>
    %6 = arith.mulf %5, %1 : vector<4x8x64xf32>
    %cst = arith.constant dense<0.000000e+00> : vector<4x8xf32>
    %7 = vector.multi_reduction <add>, %6, %cst [2] : vector<4x8x64xf32> to vector<4x8xf32>
    %c0_i32 = arith.constant 0 : i32
    %8 = vector.broadcast %c0_i32 : i32 to vector<4x8xi32>
    %9 = arith.cmpi eq, %3, %8 : vector<4x8xi32>
    %cst_9 = arith.constant -1.000000e+20 : f32
    %10 = vector.broadcast %cst_9 : f32 to vector<4x8xf32>
    %11 = arith.select %9, %10, %7 : vector<4x8xi1>, vector<4x8xf32>
    %cst_10 = arith.constant dense<0xFF800000> : vector<4xf32>
    %12 = vector.multi_reduction <maximumf>, %11, %cst_10 [1] : vector<4x8xf32> to vector<4xf32>
    %13 = vector.shape_cast %12 : vector<4xf32> to vector<4x1xf32>
    %14 = vector.broadcast %13 : vector<4x1xf32> to vector<4x8xf32>
    %15 = arith.subf %11, %14 : vector<4x8xf32>
    %16 = math.exp %15 : vector<4x8xf32>
    %cst_11 = arith.constant dense<0.000000e+00> : vector<4xf32>
    %17 = vector.multi_reduction <add>, %16, %cst_11 [1] : vector<4x8xf32> to vector<4xf32>
    %18 = vector.shape_cast %17 : vector<4xf32> to vector<4x1xf32>
    %19 = vector.broadcast %18 : vector<4x1xf32> to vector<4x8xf32>
    %20 = arith.divf %16, %19 : vector<4x8xf32>
    %21 = vector.shape_cast %20 : vector<4x8xf32> to vector<4x8x1xf32>
    %22 = vector.broadcast %21 : vector<4x8x1xf32> to vector<4x8x64xf32>
    %23 = arith.mulf %22, %2 : vector<4x8x64xf32>
    %cst_12 = arith.constant dense<0.000000e+00> : vector<4x64xf32>
    %24 = vector.multi_reduction <add>, %23, %cst_12 [1] : vector<4x8x64xf32> to vector<4x64xf32>
    %25 = math.tanh %24 : vector<4x64xf32>
    %c0_13 = arith.constant 0 : index
    %c0_14 = arith.constant 0 : index
    %26 = vector.load %arg5[%c0_13, %c0_14] : memref<4x64xf32, #tpu.memory_space<vmem>>, vector<4x64xf32>
    tpu.vector_store %arg5[%c0_13, %c0_14], %25 {strides = array<i32>} : memref<4x64xf32, #tpu.memory_space<vmem>>, vector<4x64xf32>,
    %c0_15 = arith.constant 0 : index
    %c0_16 = arith.constant 0 : index
    %27 = vector.load %arg6[%c0_15, %c0_16] : memref<4x8xf32, #tpu.memory_space<vmem>>, vector<4x8xf32>
    tpu.vector_store %arg6[%c0_15, %c0_16], %20 {strides = array<i32>} : memref<4x8xf32, #tpu.memory_space<vmem>>, vector<4x8xf32>,
    return
  }
  func.func @transform_0(%arg0: i32) -> (i32, i32) {
    %c0_i32 = arith.constant 0 : i32
    %c0_i32_0 = arith.constant 0 : i32
    return %arg0, %c0_i32 : i32, i32
  }
  func.func @transform_1(%arg0: i32) -> (i32, i32, i32) {
    %c0_i32 = arith.constant 0 : i32
    %c0_i32_0 = arith.constant 0 : i32
    %c0_i32_1 = arith.constant 0 : i32
    return %arg0, %c0_i32, %c0_i32_0 : i32, i32, i32
  }
  func.func @transform_2(%arg0: i32) -> (i32, i32, i32) {
    %c0_i32 = arith.constant 0 : i32
    %c0_i32_0 = arith.constant 0 : i32
    %c0_i32_1 = arith.constant 0 : i32
    return %arg0, %c0_i32, %c0_i32_0 : i32, i32, i32
  }
  func.func @transform_3(%arg0: i32) -> (i32, i32) {
    %c0_i32 = arith.constant 0 : i32
    %c0_i32_0 = arith.constant 0 : i32
    return %arg0, %c0_i32 : i32, i32
  }
  func.func @transform_4(%arg0: i32) -> (i32, i32) {
    %c0_i32 = arith.constant 0 : i32
    %c0_i32_0 = arith.constant 0 : i32
    return %arg0, %c0_i32 : i32, i32
  }
  func.func @transform_5(%arg0: i32) -> (i32, i32) {
    %c0_i32 = arith.constant 0 : i32
    %c0_i32_0 = arith.constant 0 : i32
    return %arg0, %c0_i32 : i32, i32
  }
}

</mosaic_0001>

<llo_original>
// kernel: tpu_custom_call.1
$region0: #{tpu_custom_call.1}
  #allocation0 [shape = 'u32[]', space=smem, size = 0x4, offset = 0x4, fixed_abs, tag = 'smem constant byte address 0x4 - core index']
  #allocation1 [shape = 'u32[72,128]{1,0:T(1,128)}', space=vmem, size = 0x9000, scoped, tag = 'internal scratch']
  %s0 = inlined_call_operand.hbm [shape: f32[4,64], index: 0, kind: input, shape index: {}]
  %s1 = inlined_call_operand.hbm [shape: f32[4,8,64], index: 1, kind: input, shape index: {}]
  %s2 = inlined_call_operand.hbm [shape: f32[4,8,64], index: 2, kind: input, shape index: {}]
  %s3 = inlined_call_operand.hbm [shape: s32[4,8], index: 3, kind: input, shape index: {}]
  %s4 = inlined_call_operand.hbm [shape: f32[4,64], index: 4, kind: output, shape index: {0}]
  %s5 = inlined_call_operand.hbm [shape: f32[4,8], index: 5, kind: output, shape index: {1}]
  %6 = xla_tuple %s4, %s5
  %s7 = sld [smem:[#allocation0]]
  $region50: #{tpu_custom_call.1} parent=0
    _
  %s9 = ssub.s32 1, %s7
  %s10 = scalar_select 0, %s9, %s7
  $region1: #{tpu_custom_call.1} parent=0
    #allocation2 [shape = 'u8[2048]{0}', space=vmem, size = 0x800, scoped, tag = 'input window, operand 0, single buffered']
    #allocation3 [shape = 's32[1]{0}', space=sflag, size = 0x4, scoped, tag = 'scoped memory for tpu_custom_call.1']
    #allocation4 [shape = 's32[1]{0}', space=sflag, size = 0x4, scoped, tag = 'scoped memory for tpu_custom_call.1']
    #allocation5 [shape = 'u8[16384]{0}', space=vmem, size = 0x4000, scoped, tag = 'input window, operand 1, single buffered']
    #allocation6 [shape = 's32[1]{0}', space=sflag, size = 0x4, scoped, tag = 'scoped memory for tpu_custom_call.1']
    #allocation7 [shape = 'u8[16384]{0}', space=vmem, size = 0x4000, scoped, tag = 'input window, operand 2, single buffered']
    #allocation8 [shape = 'u8[2048]{0}', space=vmem, size = 0x800, scoped, tag = 'input window, operand 3, single buffered']
    #allocation9 [shape = 's32[1]{0}', space=sflag, size = 0x4, scoped, tag = 'scoped memory for tpu_custom_call.1']
    #allocation10 [shape = 'u8[2048]{0}', space=vmem, size = 0x800, scoped, tag = 'output window, operand 0, single buffered']
    #allocation11 [shape = 'u8[2048]{0}', space=vmem, size = 0x800, scoped, tag = 'output window, operand 1, single buffered']
    #allocation12 [shape = 's32[1]{0}', space=sflag, size = 0x4, scoped, tag = 'scoped memory for tpu_custom_call.1']
    %11 = vsyncpa [#allocation3], 0
    %12 = vsyncpa [#allocation6], 0
    %13 = vsyncpa [#allocation9], 0
    %14 = vsyncpa [#allocation4], 0
    %15 = vsyncpa [#allocation12], 0
    // Predicated region
    $region2: #{tpu_custom_call.1} parent=1 // pred_check
      _
    $region3: #{tpu_custom_call.1} parent=1 // pred_check_branch
      %17 = sbr.rel (0) target = $region5
    $region4: #{tpu_custom_call.1} parent=1 // pred_region
      %19 = vsyncadd [#allocation3], 0
      %s21 = sshll.u32 %s0, 4
      %s22 = int_to_ptr.hbm [resolvable:$true] %s21
      %s23 = sshll.u32 [#allocation2], 4
      %s24 = int_to_ptr.vmem [resolvable:$true] %s23
      %26 = dma.hbm_to_vmem [thread:$0]  %s22, 64, %s24, [#allocation3]
    $region5: #{tpu_custom_call.1} parent=1 // pred_fallthru
      _
    // Predicated region
    $region6: #{tpu_custom_call.1} parent=1 // pred_check
      _
    $region7: #{tpu_custom_call.1} parent=1 // pred_check_branch
      %28 = sbr.rel (0) target = $region9
    $region8: #{tpu_custom_call.1} parent=1 // pred_region
      %30 = vsyncadd [#allocation6], 0
      %s31 = sshll.u32 %s1, 4
      %s32 = int_to_ptr.hbm [resolvable:$true] %s31
      %s33 = sshll.u32 [#allocation5], 4
      %s34 = int_to_ptr.vmem [resolvable:$true] %s33
      %39 = dma.hbm_to_vmem [thread:$0]  %s32, 512, %s34, [#allocation6], 128, 128, 8
    $region9: #{tpu_custom_call.1} parent=1 // pred_fallthru
      _
    // Predicated region
    $region10: #{tpu_custom_call.1} parent=1 // pred_check
      _
    $region11: #{tpu_custom_call.1} parent=1 // pred_check_branch
      %41 = sbr.rel (0) target = $region13
    $region12: #{tpu_custom_call.1} parent=1 // pred_region
      %43 = vsyncadd [#allocation6], 0
      %s44 = sshll.u32 %s2, 4
      %s45 = int_to_ptr.hbm [resolvable:$true] %s44
      %s46 = sshll.u32 [#allocation7], 4
      %s47 = int_to_ptr.vmem [resolvable:$true] %s46
      %52 = dma.hbm_to_vmem [thread:$0]  %s45, 512, %s47, [#allocation6], 128, 128, 8
    $region13: #{tpu_custom_call.1} parent=1 // pred_fallthru
      _
    // Predicated region
    $region14: #{tpu_custom_call.1} parent=1 // pred_check
      _
    $region15: #{tpu_custom_call.1} parent=1 // pred_check_branch
      %54 = sbr.rel (0) target = $region17
    $region16: #{tpu_custom_call.1} parent=1 // pred_region
      %56 = vsyncadd [#allocation9], 0
      %s58 = sshll.u32 %s3, 4
      %s59 = int_to_ptr.hbm [resolvable:$true] %s58
      %s60 = sshll.u32 [#allocation8], 4
      %s61 = int_to_ptr.vmem [resolvable:$true] %s60
      %63 = dma.hbm_to_vmem [thread:$0]  %s59, 64, %s61, [#allocation9]
    $region17: #{tpu_custom_call.1} parent=1 // pred_fallthru
      _
    // Predicated region
    $region18: #{tpu_custom_call.1} parent=1 // pred_check
      _
    $region19: #{tpu_custom_call.1} parent=1 // pred_check_branch
      %65 = sbr.rel (0) target = $region21
    $region20: #{tpu_custom_call.1} parent=1 // pred_region
      %67 = dma.done [#allocation3], 64
    $region21: #{tpu_custom_call.1} parent=1 // pred_fallthru
      _
    // Predicated region
    $region22: #{tpu_custom_call.1} parent=1 // pred_check
      _
    $region23: #{tpu_custom_call.1} parent=1 // pred_check_branch
      %69 = sbr.rel (0) target = $region25
    $region24: #{tpu_custom_call.1} parent=1 // pred_region
      %71 = dma.done [#allocation6], 512
    $region25: #{tpu_custom_call.1} parent=1 // pred_fallthru
      _
    // Predicated region
    $region26: #{tpu_custom_call.1} parent=1 // pred_check
      _
    $region27: #{tpu_custom_call.1} parent=1 // pred_check_branch
      %73 = sbr.rel (0) target = $region29
    $region28: #{tpu_custom_call.1} parent=1 // pred_region
      %75 = dma.done [#allocation6], 512
    $region29: #{tpu_custom_call.1} parent=1 // pred_fallthru
      _
    // Predicated region
    $region30: #{tpu_custom_call.1} parent=1 // pred_check
      _
    $region31: #{tpu_custom_call.1} parent=1 // pred_check_branch
      %77 = sbr.rel (0) target = $region33
    $region32: #{tpu_custom_call.1} parent=1 // pred_region
      %79 = dma.done [#allocation9], 64
    $region33: #{tpu_custom_call.1} parent=1 // pred_fallthru
      _
    %v80 = vld [vmem:[#allocation2] sm:$0xf]
    %v81 = vld [vmem:[#allocation5] sm:$0xff]
    %v82 = vld [vmem:[#allocation5 + $0x8] sm:$0xff]
    %v83 = vld [vmem:[#allocation5 + $0x10] sm:$0xff]
    %v84 = vld [vmem:[#allocation5 + $0x18] sm:$0xff]
    %v85 = vld [vmem:[#allocation7] sm:$0xff]
    %v86 = vld [vmem:[#allocation7 + $0x8] sm:$0xff]
    %v87 = vld [vmem:[#allocation7 + $0x10] sm:$0xff]
    %v88 = vld [vmem:[#allocation7 + $0x18] sm:$0xff]
    %v89 = vld [vmem:[#allocation8] sm:$0xf]
    %v91 = vrot.slane %v80, 1
    %v92 = vrot.slane %v80, 2
    %v93 = vrot.slane %v80, 3
    %v94 = vperm.slane %v80, 0
    %v95 = vperm.slane %v91, 0
    %v96 = vperm.slane %v92, 0
    %v97 = vperm.slane %v93, 0
    %v102 = vmul.f32 %v94, %v81
    %v103 = vmul.f32 %v95, %v82
    %v104 = vmul.f32 %v96, %v83
    %v105 = vmul.f32 %v97, %v84
    %vm106 = vcmask 523264
    %v107 = vsel %vm106, %v102, 0.0
    %108 = vadd.xlane.f32.xlu0 %v107
    %v109 = vpop.xlane.xlu0 %108
    %v110 = vsel %vm106, %v103, 0.0
    %111 = vadd.xlane.f32.xlu0 %v110
    %v112 = vpop.xlane.xlu0 %111
    %v113 = vsel %vm106, %v104, 0.0
    %114 = vadd.xlane.f32.xlu0 %v113
    %v115 = vpop.xlane.xlu0 %114
    %v116 = vsel %vm106, %v105, 0.0
    %117 = vadd.xlane.f32.xlu0 %v116
    %v118 = vpop.xlane.xlu0 %117
    %vm119 = vcmp.eq.s32.totalorder %v89, 0
    %v124 = vlaneseq
    %v125 = vand.u32 %v124, 127
    %v126 = vperm.slane %v109, %v125
    %v127 = vperm.slane %v112, %v125
    %v128 = vperm.slane %v115, %v125
    %v129 = vperm.slane %v118, %v125
    %vm130 = vcmask 1041409
    %v131 = vsel %vm130, %v127, %v126
    %vm132 = vcmask 1042434
    %v133 = vsel %vm132, %v128, %v131
    %vm134 = vcmask 1043459
    %v135 = vsel %vm134, %v129, %v133
    %v137 = vsel %vm119, -1e+20, %v135
    %vm138 = vcmask 60416
    %v139 = vsel %vm138, %v137, -inf
    %140 = vmax.xlane.f32.xlu0 %v139
    %v141 = vpop.xlane.xlu0 %140
    %v142 = vsub.f32 %v137, %v141
    %v143 = vmul.f32 %v142, 1.442695
    %v144 = vpow.pop %v143
    %v145 = vsel %vm138, %v144, 0.0
    %146 = vadd.xlane.f32.xlu0 %v145
    %v147 = vpop.xlane.xlu0 %146
    %v148 = vrcp.pop %v147
    %v149 = vmul.f32 %v147, %v148
    %v150 = vsub.f32 1.0, %v149
    %v151 = vmul.f32 %v148, %v150
    %v152 = vadd.f32 %v148, %v151
    %vm153 = vweird.f32 %v147
    %vm154 = vweird.f32 %v148
    %vm155 = vmor %vm153, %vm154
    %v156 = vsel %vm155, %v148, %v152
    %v157 = vand.u32 2147483647, %v147
    %vm158 = vcmp.eq.f32.partialorder %v157, 8.507059e+37
    %v159 = vand.u32 %v147, 2147483648
    %v160 = vor.u32 1.1754944e-38, %v159
    %v161 = vsel %vm158, %v160, %v156
    %v162 = vmul.f32 %v144, %v161
    %v163 = vperm.slane %v162, 0
    %v164 = vlaneseq
    %v165 = vshrl.u32 %v164, 7
    %167 = vset.pattern.permute.xlu0 %v165
    %168 = vperm.xlu0 %167, %v163
    %v169 = vpop.permute.xlu0 %168
    %v170 = vperm.slane %v162, 1
    %v171 = vlaneseq
    %v172 = vshrl.u32 %v171, 7
    %174 = vset.pattern.permute.xlu0 %v172
    %175 = vperm.xlu0 %174, %v170
    %v176 = vpop.permute.xlu0 %175
    %v177 = vperm.slane %v162, 2
    %v178 = vlaneseq
    %v179 = vshrl.u32 %v178, 7
    %181 = vset.pattern.permute.xlu0 %v179
    %182 = vperm.xlu0 %181, %v177
    %v183 = vpop.permute.xlu0 %182
    %v184 = vperm.slane %v162, 3
    %v185 = vlaneseq
    %v186 = vshrl.u32 %v185, 7
    %188 = vset.pattern.permute.xlu0 %v186
    %189 = vperm.xlu0 %188, %v184
    %v190 = vpop.permute.xlu0 %189
    %v191 = vmul.f32 %v169, %v85
    %v192 = vmul.f32 %v176, %v86
    %v193 = vmul.f32 %v183, %v87
    %v194 = vmul.f32 %v190, %v88
    %v195 = vsel %vm106, %v191, 0.0
    %v196 = vrot.slane %v195, 4
    %v197 = vadd.f32 %v195, %v196
    %v198 = vrot.slane %v197, 2
    %v199 = vadd.f32 %v197, %v198
    %v200 = vrot.slane %v199, 1
    %v201 = vadd.f32 %v199, %v200
    %v202 = vsel %vm106, %v192, 0.0
    %v203 = vrot.slane %v202, 4
    %v204 = vadd.f32 %v202, %v203
    %v205 = vrot.slane %v204, 2
    %v206 = vadd.f32 %v204, %v205
    %v207 = vrot.slane %v206, 1
    %v208 = vadd.f32 %v206, %v207
    %v209 = vsel %vm106, %v193, 0.0
    %v210 = vrot.slane %v209, 4
    %v211 = vadd.f32 %v209, %v210
    %v212 = vrot.slane %v211, 2
    %v213 = vadd.f32 %v211, %v212
    %v214 = vrot.slane %v213, 1
    %v215 = vadd.f32 %v213, %v214
    %v216 = vsel %vm106, %v194, 0.0
    %v217 = vrot.slane %v216, 4
    %v218 = vadd.f32 %v216, %v217
    %v219 = vrot.slane %v218, 2
    %v220 = vadd.f32 %v218, %v219
    %v221 = vrot.slane %v220, 1
    %v222 = vadd.f32 %v220, %v221
    %v223 = vtanh.pop %v201
    %v224 = vtanh.pop %v208
    %v225 = vtanh.pop %v215
    %v226 = vtanh.pop %v222
    %v231 = vsel %vm130, %v224, %v223
    %v232 = vsel %vm132, %v225, %v231
    %v233 = vsel %vm134, %v226, %v232
    %vm235 = vcmask 519168
    %236 = vst.msk [vmem:[#allocation10] sm:$0xf] %vm235, %v233
    %237 = vst.msk [vmem:[#allocation11] sm:$0xf] %vm138, %v162
    // Predicated region
    $region34: #{tpu_custom_call.1} parent=1 // pred_check
      _
    $region35: #{tpu_custom_call.1} parent=1 // pred_check_branch
      %239 = sbr.rel (0) target = $region37
    $region36: #{tpu_custom_call.1} parent=1 // pred_region
      %241 = vsyncadd [#allocation4], 0
      %s243 = sshll.u32 [#allocation10], 4
      %s244 = int_to_ptr.vmem [resolvable:$true] %s243
      %s245 = sshll.u32 %s4, 4
      %s246 = int_to_ptr.hbm [resolvable:$true] %s245
      %248 = dma.vmem_to_hbm [thread:$0]  %s244, 64, %s246, [#allocation4]
    $region37: #{tpu_custom_call.1} parent=1 // pred_fallthru
      _
    // Predicated region
    $region38: #{tpu_custom_call.1} parent=1 // pred_check
      _
    $region39: #{tpu_custom_call.1} parent=1 // pred_check_branch
      %250 = sbr.rel (0) target = $region41
    $region40: #{tpu_custom_call.1} parent=1 // pred_region
      %252 = vsyncadd [#allocation12], 0
      %s254 = sshll.u32 [#allocation11], 4
      %s255 = int_to_ptr.vmem [resolvable:$true] %s254
      %s256 = sshll.u32 %s5, 4
      %s257 = int_to_ptr.hbm [resolvable:$true] %s256
      %259 = dma.vmem_to_hbm [thread:$0]  %s255, 64, %s257, [#allocation12]
    $region41: #{tpu_custom_call.1} parent=1 // pred_fallthru
      _
    // Predicated region
    $region42: #{tpu_custom_call.1} parent=1 // pred_check
      _
    $region43: #{tpu_custom_call.1} parent=1 // pred_check_branch
      %261 = sbr.rel (0) target = $region45
    $region44: #{tpu_custom_call.1} parent=1 // pred_region
      %263 = dma.done [#allocation4], 64
    $region45: #{tpu_custom_call.1} parent=1 // pred_fallthru
      _
    // Predicated region
    $region46: #{tpu_custom_call.1} parent=1 // pred_check
      _
    $region47: #{tpu_custom_call.1} parent=1 // pred_check_branch
      %265 = sbr.rel (0) target = $region49
    $region48: #{tpu_custom_call.1} parent=1 // pred_region
      %267 = dma.done [#allocation12], 64
    $region49: #{tpu_custom_call.1} parent=1 // pred_fallthru
      _
    %268 = vsyncpa [#allocation3], 1
    %269 = vsyncpa [#allocation6], 1
    %270 = vsyncpa [#allocation9], 1
    %271 = vsyncpa [#allocation4], 1
    %272 = vsyncpa [#allocation12], 1

</llo_original>
